<compile_context>
chip_gen: v7x
topology: tpu7x:2x2x1
jax: 0.10.0
libtpu: 0.0.40
codegen_flags: <defaults>
</compile_context>

<pallas_src>
import jax
import jax.numpy as jnp
from jax.experimental import pallas as pl
from jax.experimental.pallas import tpu as pltpu


def _round_up(x, m):
    return ((x + m - 1) // m) * m


def cross_encoder_kernel(r1_ref, r2_ref, w1_ref, b1_ref, w2t_ref, b2_ref, out_ref):
    # Squared difference of the two representations (do_encoder_diff=True).
    # Upcast so elementwise math is f32 even if inputs arrive as bf16.
    d = r1_ref[...].astype(jnp.float32) - r2_ref[...].astype(jnp.float32)
    x = d * d                                                        # (TM, P*D)

    # Hidden layer: block-diagonal Linear + ReLU.  Each P*D-wide packed row
    # holds P independent batch rows; the block-diagonal W1 keeps them
    # independent while the MXU sees a dense K=P*D, N=P*H matmul.
    h = jnp.dot(x, w1_ref[...], preferred_element_type=jnp.float32)  # (TM, P*H)
    h = jnp.maximum(h + b1_ref[...], 0.0)

    # Output layer: Linear(H, 1) per packed slot, computed as a transposed-RHS
    # contraction so the result lands lane-dense as (P, TM) — batch on lanes,
    # one valid copy of every answer (no replicated rows).
    y = jax.lax.dot_general(
        w2t_ref[...], h,
        dimension_numbers=(((1,), (1,)), ((), ())),
        preferred_element_type=jnp.float32,
    )                                                                # (P, TM)

    # do_sigmoid=True; single-copy, lane-dense store.
    out_ref[0] = jax.nn.sigmoid(y + b2_ref[...])


def _choose_block_rows(packed_rows, packed_cols, itemsize,
                       *, vmem_budget_bytes=12 << 20, max_rows=4096):
    """Pick the packed-row tile so 2 streams x 2 pipeline buffers fit ~12 MiB.

    Accounting uses the *lane-padded* VMEM footprint (last dim rounded up to
    128), so the budget holds even if packed_cols is not a lane multiple.
    12 MiB keeps us inside v5e's 16 MiB scoped-VMEM default (weights/output
    are tiny); v6e/v7x (32 MiB scoped default) have extra headroom.
    """
    lanes = _round_up(packed_cols, 128)
    per_row_per_buffer = lanes * itemsize
    tm = vmem_budget_bytes // (4 * per_row_per_buffer)   # 2 inputs x 2 buffers
    tm = min(max_rows, tm)
    if tm >= 128:
        # Multiple of 128 => lane-dense (unmasked) output stores.
        tm = (tm // 128) * 128
    else:
        # Very large feature dims: fall back to a multiple of 8 so the VMEM
        # budget is still respected (output stores become masked; acceptable).
        tm = max(8, (tm // 8) * 8)
    if packed_rows < tm:
        if packed_rows >= 128:
            # Keep a 128-multiple tile; the last (partial) input block just
            # reads padded rows that the wrapper trims from the output.
            tm = (packed_rows // 128) * 128
        else:
            # Tiny batch: one full-extent tile (masked stores, perf-irrelevant).
            tm = packed_rows
    return tm


def cross_encoder_forward(repr1, repr2, w1, b1, w2, b2,
                          *, block_rows=None, stream_dtype=None):
    B, D = repr1.shape
    H = w1.shape[1]

    if stream_dtype is not None:
        # bf16 streaming is a ~2x HBM win on v6e/v7x; math stays f32 in-kernel.
        repr1 = repr1.astype(stream_dtype)
        repr2 = repr2.astype(stream_dtype)

    # Lane packing factor: fold P batch rows into one 128-lane vreg row.
    P = 128 // D if (D <= 128 and 128 % D == 0) else 1

    Bp = pl.cdiv(B, P)               # packed rows
    if B % P != 0:
        pad = Bp * P - B
        repr1 = jnp.pad(repr1, ((0, pad), (0, 0)))
        repr2 = jnp.pad(repr2, ((0, pad), (0, 0)))
    r1p = repr1.reshape(Bp, P * D)   # contiguous reshape: no data movement
    r2p = repr2.reshape(Bp, P * D)

    TM = (block_rows if block_rows is not None
          else _choose_block_rows(Bp, P * D, r1p.dtype.itemsize))
    num_tiles = pl.cdiv(Bp, TM)

    # Tiny parameter layout plumbing (done once, outside the kernel):
    #   W1 -> block-diagonal (P*D, P*H);  b1 -> (1, P*H) tiled;
    #   W2 -> block-structured W2^T (P, P*H);  b2 -> (1, 1).
    eye = jnp.eye(P, dtype=jnp.float32)
    w1b = jnp.kron(eye, w1.astype(jnp.float32))                           # (P*D, P*H)
    b1b = jnp.tile(jnp.reshape(b1, (1, H)).astype(jnp.float32), (1, P))   # (1, P*H)
    w2t = jnp.kron(eye, jnp.reshape(w2, (1, H)).astype(jnp.float32))      # (P, P*H)
    b2r = jnp.reshape(b2, (1, 1)).astype(jnp.float32)

    out = pl.pallas_call(
        cross_encoder_kernel,
        out_shape=jax.ShapeDtypeStruct((num_tiles, P, TM), jnp.float32),
        grid=(num_tiles,),
        in_specs=[
            # repr streams (double-buffered by the auto pipeline).  If DMA
            # issue latency shows up at small TM, sweep
            # pipeline_mode=pl.Buffered(3) on these two specs.
            pl.BlockSpec((TM, P * D), lambda i: (i, 0)),
            pl.BlockSpec((TM, P * D), lambda i: (i, 0)),
            pl.BlockSpec((P * D, P * H), lambda i: (0, 0)),   # W1  (VMEM-resident)
            pl.BlockSpec((1, P * H), lambda i: (0, 0)),       # b1  (VMEM-resident)
            pl.BlockSpec((P, P * H), lambda i: (0, 0)),       # W2^T blocks
            pl.BlockSpec((1, 1), lambda i: (0, 0)),           # b2
        ],
        out_specs=pl.BlockSpec((1, P, TM), lambda i: (i, 0, 0)),  # lane-dense
        compiler_params=pltpu.CompilerParams(
            dimension_semantics=("parallel",),
        ),
    )(r1p, r2p, w1b, b1b, w2t, b2r)

    # out[t, k, i] holds the result for batch row (t*TM + i)*P + k.  Undo the
    # lane packing (cheap XLA pass over B floats) and trim padded rows.
    return jnp.transpose(out, (0, 2, 1)).reshape(-1)[:B]


def reference_forward(repr1, repr2, w1, b1, w2, b2):
    x = jnp.square(repr1 - repr2)
    h = jnp.maximum(x @ w1 + b1.reshape(1, -1), 0.0)
    y = h @ w2 + b2.reshape(1, 1)
    return jax.nn.sigmoid(y)[:, 0]


if __name__ == "__main__":
    # Module configuration (synthetic, deterministic):
    #   representation_mode='both' -> input_dim = embed_dim + notes_dim = 24 + 8 = 32
    #   do_encoder_diff=True       -> combined_dim = 32
    #   cross_encoder_dim=32, act_mode='relu', do_sigmoid=True
    embed_dim, notes_dim = 24, 8
    input_dim = embed_dim + notes_dim          # 32
    hidden_dim = 32                            # cross_encoder_dim

    key = jax.random.PRNGKey(0)
    k1, k2, k3, k4 = jax.random.split(key, 4)

    # deterministic readout parameters (torch.nn.Linear shapes, transposed)
    w1 = jax.random.normal(k3, (input_dim, hidden_dim), dtype=jnp.float32) * 0.1
    b1 = jnp.linspace(-0.1, 0.1, hidden_dim, dtype=jnp.float32)
    w2 = jax.random.normal(k4, (hidden_dim, 1), dtype=jnp.float32) * 0.1
    b2 = jnp.array([0.05], dtype=jnp.float32)

    # Case 1: multi-tile streamed path.  B=2048 packs to 512 rows of 128
    # lanes; block_rows=128 forces a 4-step grid so the pipelined path is
    # actually exercised at this small demo size.
    B = 2048
    repr1 = jax.random.normal(k1, (B, input_dim), dtype=jnp.float32)
    repr2 = jax.random.normal(k2, (B, input_dim), dtype=jnp.float32)
    out = cross_encoder_forward(repr1, repr2, w1, b1, w2, b2, block_rows=128)
    out = jax.block_until_ready(out)
    ref = reference_forward(repr1, repr2, w1, b1, w2, b2)
    assert out.shape == (B,), out.shape
    assert jnp.allclose(out, ref, atol=1e-4, rtol=1e-4), float(
        jnp.max(jnp.abs(out - ref)))

    # Case 2: automatic tile choice + ragged batch (exercises the pad/trim
    # path and the single full-extent tile for tiny batches).
    B2 = 203
    r1b = jax.random.normal(k1, (B2, input_dim), dtype=jnp.float32)
    r2b = jax.random.normal(k2, (B2, input_dim), dtype=jnp.float32)
    out2 = jax.block_until_ready(
        cross_encoder_forward(r1b, r2b, w1, b1, w2, b2))
    ref2 = reference_forward(r1b, r2b, w1, b1, w2, b2)
    assert out2.shape == (B2,), out2.shape
    assert jnp.allclose(out2, ref2, atol=1e-4, rtol=1e-4), float(
        jnp.max(jnp.abs(out2 - ref2)))

    print("KERNEL_OK")
</pallas_src>

<mosaic_0001>
module attributes {stable_mosaic.version = 11 : i64} {
  func.func @cross_encoder_kernel(%arg0: i32, %arg1: memref<128x128xf32, #tpu.memory_space<vmem>>, %arg2: memref<128x128xf32, #tpu.memory_space<vmem>>, %arg3: memref<128x128xf32, #tpu.memory_space<vmem>>, %arg4: memref<1x128xf32, #tpu.memory_space<vmem>>, %arg5: memref<4x128xf32, #tpu.memory_space<vmem>>, %arg6: memref<1x1xf32, #tpu.memory_space<vmem>>, %arg7: memref<1x4x128xf32, #tpu.memory_space<vmem>>) attributes {dimension_semantics = [#tpu.dimension_semantics<parallel>], iteration_bounds = array<i64: 4>, scalar_prefetch = 0 : i64, scratch_operands = 0 : i64, tpu.core_type = #tpu.core_type<tc>, window_params = [{transform_indices = @transform_0, window_bounds = array<i64: 128, 128>}, {transform_indices = @transform_1, window_bounds = array<i64: 128, 128>}, {pipeline_mode = #tpu.pipeline_mode<synchronous>, transform_indices = @transform_2, window_bounds = array<i64: 128, 128>}, {pipeline_mode = #tpu.pipeline_mode<synchronous>, transform_indices = @transform_3, window_bounds = array<i64: 1, 128>}, {pipeline_mode = #tpu.pipeline_mode<synchronous>, transform_indices = @transform_4, window_bounds = array<i64: 4, 128>}, {pipeline_mode = #tpu.pipeline_mode<synchronous>, transform_indices = @transform_5, window_bounds = array<i64: 1, 1>}, {transform_indices = @transform_6, window_bounds = array<i64: 1, 4, 128>}]} {
    %c0 = arith.constant 0 : index
    %c0_0 = arith.constant 0 : index
    %0 = vector.load %arg1[%c0, %c0_0] : memref<128x128xf32, #tpu.memory_space<vmem>>, vector<128x128xf32>
    %c0_1 = arith.constant 0 : index
    %c0_2 = arith.constant 0 : index
    %1 = vector.load %arg2[%c0_1, %c0_2] : memref<128x128xf32, #tpu.memory_space<vmem>>, vector<128x128xf32>
    %2 = arith.subf %0, %1 : vector<128x128xf32>
    %3 = arith.mulf %2, %2 : vector<128x128xf32>
    %c0_3 = arith.constant 0 : index
    %c0_4 = arith.constant 0 : index
    %4 = vector.load %arg3[%c0_3, %c0_4] : memref<128x128xf32, #tpu.memory_space<vmem>>, vector<128x128xf32>
    %cst = arith.constant dense<0.000000e+00> : vector<128x128xf32>
    %5 = tpu.matmul %3, %4, %cst {dimension_numbers = #tpu.dot_dimension_numbers<[1], [0], [0], [1], [0, 0, 1, 1], [], []>} : vector<128x128xf32>, vector<128x128xf32>, vector<128x128xf32> -> vector<128x128xf32>
    %c0_5 = arith.constant 0 : index
    %c0_6 = arith.constant 0 : index
    %6 = vector.load %arg4[%c0_5, %c0_6] : memref<1x128xf32, #tpu.memory_space<vmem>>, vector<1x128xf32>
    %7 = vector.broadcast %6 : vector<1x128xf32> to vector<128x128xf32>
    %8 = arith.addf %5, %7 : vector<128x128xf32>
    %cst_7 = arith.constant 0.000000e+00 : f32
    %9 = vector.broadcast %cst_7 : f32 to vector<128x128xf32>
    %10 = arith.maximumf %8, %9 : vector<128x128xf32>
    %c0_8 = arith.constant 0 : index
    %c0_9 = arith.constant 0 : index
    %11 = vector.load %arg5[%c0_8, %c0_9] : memref<4x128xf32, #tpu.memory_space<vmem>>, vector<4x128xf32>
    %cst_10 = arith.constant dense<0.000000e+00> : vector<4x128xf32>
    %12 = tpu.matmul %11, %10, %cst_10 {dimension_numbers = #tpu.dot_dimension_numbers<[1], [1], [0], [0], [0, 0, 1, 0], [], []>} : vector<4x128xf32>, vector<128x128xf32>, vector<4x128xf32> -> vector<4x128xf32>
    %c0_11 = arith.constant 0 : index
    %c0_12 = arith.constant 0 : index
    %13 = vector.load %arg6[%c0_11, %c0_12] : memref<1x1xf32, #tpu.memory_space<vmem>>, vector<1x1xf32>
    %14 = vector.broadcast %13 : vector<1x1xf32> to vector<4x128xf32>
    %15 = arith.addf %12, %14 : vector<4x128xf32>
    %16 = arith.negf %15 : vector<4x128xf32>
    %17 = math.exp %16 : vector<4x128xf32>
    %cst_13 = arith.constant 1.000000e+00 : f32
    %18 = vector.broadcast %cst_13 : f32 to vector<4x128xf32>
    %19 = arith.addf %18, %17 : vector<4x128xf32>
    %20 = arith.divf %18, %19 : vector<4x128xf32>
    %c0_14 = arith.constant 0 : index
    %c0_15 = arith.constant 0 : index
    %c0_16 = arith.constant 0 : index
    %21 = vector.load %arg7[%c0_14, %c0_15, %c0_16] : memref<1x4x128xf32, #tpu.memory_space<vmem>>, vector<1x4x128xf32>
    %22 = vector.shape_cast %21 : vector<1x4x128xf32> to vector<4x128xf32>
    %23 = vector.shape_cast %20 : vector<4x128xf32> to vector<1x4x128xf32>
    tpu.vector_store %arg7[%c0_14, %c0_15, %c0_16], %23 {strides = array<i32>} : memref<1x4x128xf32, #tpu.memory_space<vmem>>, vector<1x4x128xf32>,
    return
  }
  func.func @transform_0(%arg0: i32) -> (i32, i32) {
    %c0_i32 = arith.constant 0 : i32
    %c0_i32_0 = arith.constant 0 : i32
    return %arg0, %c0_i32 : i32, i32
  }
  func.func @transform_1(%arg0: i32) -> (i32, i32) {
    %c0_i32 = arith.constant 0 : i32
    %c0_i32_0 = arith.constant 0 : i32
    return %arg0, %c0_i32 : i32, i32
  }
  func.func @transform_2(%arg0: i32) -> (i32, i32) {
    %c0_i32 = arith.constant 0 : i32
    %c0_i32_0 = arith.constant 0 : i32
    %c0_i32_1 = arith.constant 0 : i32
    return %c0_i32, %c0_i32_0 : i32, i32
  }
  func.func @transform_3(%arg0: i32) -> (i32, i32) {
    %c0_i32 = arith.constant 0 : i32
    %c0_i32_0 = arith.constant 0 : i32
    %c0_i32_1 = arith.constant 0 : i32
    return %c0_i32, %c0_i32_0 : i32, i32
  }
  func.func @transform_4(%arg0: i32) -> (i32, i32) {
    %c0_i32 = arith.constant 0 : i32
    %c0_i32_0 = arith.constant 0 : i32
    %c0_i32_1 = arith.constant 0 : i32
    return %c0_i32, %c0_i32_0 : i32, i32
  }
  func.func @transform_5(%arg0: i32) -> (i32, i32) {
    %c0_i32 = arith.constant 0 : i32
    %c0_i32_0 = arith.constant 0 : i32
    %c0_i32_1 = arith.constant 0 : i32
    return %c0_i32, %c0_i32_0 : i32, i32
  }
  func.func @transform_6(%arg0: i32) -> (i32, i32, i32) {
    %c0_i32 = arith.constant 0 : i32
    %c0_i32_0 = arith.constant 0 : i32
    %c0_i32_1 = arith.constant 0 : i32
    return %arg0, %c0_i32, %c0_i32_0 : i32, i32, i32
  }
}

</mosaic_0001>

<llo_original>
// kernel: tpu_custom_call.1
$region0: #{tpu_custom_call.1}
  #allocation0 [shape = 'u32[]', space=smem, size = 0x4, offset = 0x4, fixed_abs, tag = 'smem constant byte address 0x4 - core index']
  #allocation1 [shape = 'u32[144,128]{1,0:T(1,128)}', space=vmem, size = 0x12000, scoped, tag = 'internal scratch']
  #allocation2 [shape = 'f32[1,1]{1,0:T(1,128)S(1)}', space=vmem, size = 0x200, scoped, tag = 'scoped memory for tpu_custom_call.1']
  %s0 = inlined_call_operand.hbm [shape: f32[512,128], index: 0, kind: input, shape index: {}]
  %s1 = inlined_call_operand.hbm [shape: f32[512,128], index: 1, kind: input, shape index: {}]
  %s2 = inlined_call_operand.hbm [shape: f32[128,128], index: 2, kind: input, shape index: {}]
  %s3 = inlined_call_operand.vmem [shape: f32[1,128], index: 3, kind: input, shape index: {}]
  %s4 = inlined_call_operand.vmem [shape: f32[4,128], index: 4, kind: input, shape index: {}]
  %s5 = inlined_call_operand.<no memory space> [shape: f32[1,1], index: 5, kind: input, shape index: {}]
  %s6 = inlined_call_operand.hbm [shape: f32[4,4,128], index: 6, kind: output, shape index: {}]
  %s7 = sld [smem:[#allocation0]]
  $region69: #{tpu_custom_call.1} parent=0
    _
  %s9 = ssub.s32 1, %s7
  %s10 = scalar_select 0, %s9, %s7
  %v11 = vstv %s5
  %12 = vst [vmem:[#allocation2] sm:$0x1] %v11
  $region1: #{tpu_custom_call.1} parent=0
    #allocation3 [shape = 'u8[131072]{0}', space=vmem, size = 0x20000, scoped, tag = 'input window, operand 0']
    #allocation4 [shape = 's32[2]{0}', space=sflag, size = 0x8, scoped, tag = 'scoped memory for tpu_custom_call.1']
    #allocation5 [shape = 's32[2]{0}', space=sflag, size = 0x8, scoped, tag = 'scoped memory for tpu_custom_call.1']
    #allocation6 [shape = 'u8[131072]{0}', space=vmem, size = 0x20000, scoped, tag = 'input window, operand 1']
    #allocation7 [shape = 's32[2]{0}', space=sflag, size = 0x8, scoped, tag = 'scoped memory for tpu_custom_call.1']
    #allocation8 [shape = 'u8[65536]{0}', space=vmem, size = 0x10000, scoped, tag = 'input window, operand 2, single buffered']
    #allocation9 [shape = 'u8[4096]{0}', space=vmem, size = 0x1000, scoped, tag = 'output window, operand 0']
    %13 = vsyncpa [#allocation4], 0
    %s14 = scalar_lea.sflag [#allocation4], 1
    %15 = vsyncpa %s14, 0
    %16 = vsyncpa [#allocation7], 0
    %s17 = scalar_lea.sflag [#allocation7], 1
    %18 = vsyncpa %s17, 0
    %19 = vsyncpa [#allocation5], 0
    %s20 = scalar_lea.sflag [#allocation5], 1
    %21 = vsyncpa %s20, 0
    loop: start=0, step=1, limit=6
    $region2: #{tpu_custom_call.1} parent=1 // loop_pre_header
      _
    $region3: #{tpu_custom_call.1} parent=1 // loop_header
      %s23 = sphi 0, %s27
      %p24 = scmp.ge.s32.totalorder %s23, 6
      %s33 = sphi 0, %s35
      %s36 = sphi 0, %s33
      %s37 = sphi 0, %s36
      %s53 = sphi 0, %s37
      %s59 = sphi 0, %s61
      %s62 = sphi 0, %s59
      %s63 = sphi 0, %s62
      %s79 = sphi 0, %s63
      %s83 = sphi 0, %s83
      %s85 = sphi 0, %s83
      %s86 = sphi 0, %s85
      %s100 = sphi 0, %s86
      %s104 = sphi 0, %s104
      %s106 = sphi 0, %s104
      %s107 = sphi 0, %s106
      %s121 = sphi 0, %s107
      %s125 = sphi 0, %s125
      %s127 = sphi 0, %s125
      %s128 = sphi 0, %s127
      %s142 = sphi 0, %s128
      %s146 = sphi 0, %s146
      %s148 = sphi 0, %s146
      %s149 = sphi 0, %s148
      %s163 = sphi 0, %s149
      %s169 = sphi 0, %s171
      %s172 = sphi 0, %s169
      %s173 = sphi 0, %s172
      %s189 = sphi 0, %s173
    $region4: #{tpu_custom_call.1} parent=1 // loop_header_branch
      %26 = sbr.rel (%p24) target = $region8
    $region5: #{tpu_custom_call.1} parent=1 // loop_body
      %s28 = ssub.s32 %s23, 1
      %s29 = ssub.s32 %s23, 2
      %s30 = sadd.s32 %s23, 1
      %s31 = ssub.s32 %s23, %s30
      %p32 = scmp.eq.s32.totalorder %s31, 0
      %s34 = sadd.s32 %s33, 1
      %s35 = scalar_select %p32, %s33, %s34
      %p38 = pneg %p32
      %p39 = scmp.eq.s32.totalorder %s23, 3
      %p40 = por %p38, %p39
      %p41 = scmp.ne.s32.totalorder %s33, %s36
      %p42 = scmp.eq.s32.totalorder %s23, 0
      %p43 = por %p41, %p42
      %p44 = scmp.ne.s32.totalorder %s33, %s36
      %p45 = scmp.eq.s32.totalorder %s28, 3
      %p46 = por %p44, %p45
      %p47 = scmp.ne.s32.totalorder %s36, %s37
      %p48 = scmp.eq.s32.totalorder %s28, 0
      %p49 = por %p47, %p48
      %p50 = scmp.ne.s32.totalorder %s36, %s37
      %p51 = scmp.eq.s32.totalorder %s29, 3
      %p52 = por %p50, %p51
      %p54 = scmp.ne.s32.totalorder %s37, %s53
      %p55 = scmp.eq.s32.totalorder %s29, 0
      %p56 = por %p54, %p55
      %s57 = ssub.s32 %s23, %s30
      %p58 = scmp.eq.s32.totalorder %s57, 0
      %s60 = sadd.s32 %s59, 1
      %s61 = scalar_select %p58, %s59, %s60
      %p64 = pneg %p58
      %p65 = scmp.eq.s32.totalorder %s23, 3
      %p66 = por %p64, %p65
      %p67 = scmp.ne.s32.totalorder %s59, %s62
      %p68 = scmp.eq.s32.totalorder %s23, 0
      %p69 = por %p67, %p68
      %p70 = scmp.ne.s32.totalorder %s59, %s62
      %p71 = scmp.eq.s32.totalorder %s28, 3
      %p72 = por %p70, %p71
      %p73 = scmp.ne.s32.totalorder %s62, %s63
      %p74 = scmp.eq.s32.totalorder %s28, 0
      %p75 = por %p73, %p74
      %p76 = scmp.ne.s32.totalorder %s62, %s63
      %p77 = scmp.eq.s32.totalorder %s29, 3
      %p78 = por %p76, %p77
      %p80 = scmp.ne.s32.totalorder %s63, %s79
      %p81 = scmp.eq.s32.totalorder %s29, 0
      %p82 = por %p80, %p81
      %s84 = sadd.s32 %s83, 1
      %p87 = scmp.eq.s32.totalorder %s23, 3
      %p88 = scmp.ne.s32.totalorder %s83, %s85
      %p89 = scmp.eq.s32.totalorder %s23, 0
      %p90 = por %p88, %p89
      %p91 = scmp.ne.s32.totalorder %s83, %s85
      %p92 = scmp.eq.s32.totalorder %s28, 3
      %p93 = por %p91, %p92
      %p94 = scmp.ne.s32.totalorder %s85, %s86
      %p95 = scmp.eq.s32.totalorder %s28, 0
      %p96 = por %p94, %p95
      %p97 = scmp.ne.s32.totalorder %s85, %s86
      %p98 = scmp.eq.s32.totalorder %s29, 3
      %p99 = por %p97, %p98
      %p101 = scmp.ne.s32.totalorder %s86, %s100
      %p102 = scmp.eq.s32.totalorder %s29, 0
      %p103 = por %p101, %p102
      %s105 = sadd.s32 %s104, 1
      %p108 = scmp.eq.s32.totalorder %s23, 3
      %p109 = scmp.ne.s32.totalorder %s104, %s106
      %p110 = scmp.eq.s32.totalorder %s23, 0
      %p111 = por %p109, %p110
      %p112 = scmp.ne.s32.totalorder %s104, %s106
      %p113 = scmp.eq.s32.totalorder %s28, 3
      %p114 = por %p112, %p113
      %p115 = scmp.ne.s32.totalorder %s106, %s107
      %p116 = scmp.eq.s32.totalorder %s28, 0
      %p117 = por %p115, %p116
      %p118 = scmp.ne.s32.totalorder %s106, %s107
      %p119 = scmp.eq.s32.totalorder %s29, 3
      %p120 = por %p118, %p119
      %p122 = scmp.ne.s32.totalorder %s107, %s121
      %p123 = scmp.eq.s32.totalorder %s29, 0
      %p124 = por %p122, %p123
      %s126 = sadd.s32 %s125, 1
      %p129 = scmp.eq.s32.totalorder %s23, 3
      %p130 = scmp.ne.s32.totalorder %s125, %s127
      %p131 = scmp.eq.s32.totalorder %s23, 0
      %p132 = por %p130, %p131
      %p133 = scmp.ne.s32.totalorder %s125, %s127
      %p134 = scmp.eq.s32.totalorder %s28, 3
      %p135 = por %p133, %p134
      %p136 = scmp.ne.s32.totalorder %s127, %s128
      %p137 = scmp.eq.s32.totalorder %s28, 0
      %p138 = por %p136, %p137
      %p139 = scmp.ne.s32.totalorder %s127, %s128
      %p140 = scmp.eq.s32.totalorder %s29, 3
      %p141 = por %p139, %p140
      %p143 = scmp.ne.s32.totalorder %s128, %s142
      %p144 = scmp.eq.s32.totalorder %s29, 0
      %p145 = por %p143, %p144
      %s147 = sadd.s32 %s146, 1
      %p150 = scmp.eq.s32.totalorder %s23, 3
      %p151 = scmp.ne.s32.totalorder %s146, %s148
      %p152 = scmp.eq.s32.totalorder %s23, 0
      %p153 = por %p151, %p152
      %p154 = scmp.ne.s32.totalorder %s146, %s148
      %p155 = scmp.eq.s32.totalorder %s28, 3
      %p156 = por %p154, %p155
      %p157 = scmp.ne.s32.totalorder %s148, %s149
      %p158 = scmp.eq.s32.totalorder %s28, 0
      %p159 = por %p157, %p158
      %p160 = scmp.ne.s32.totalorder %s148, %s149
      %p161 = scmp.eq.s32.totalorder %s29, 3
      %p162 = por %p160, %p161
      %p164 = scmp.ne.s32.totalorder %s149, %s163
      %p165 = scmp.eq.s32.totalorder %s29, 0
      %p166 = por %p164, %p165
      %s167 = ssub.s32 %s23, %s30
      %p168 = scmp.eq.s32.totalorder %s167, 0
      %s170 = sadd.s32 %s169, 1
      %s171 = scalar_select %p168, %s169, %s170
      %p174 = pneg %p168
      %p175 = scmp.eq.s32.totalorder %s23, 3
      %p176 = por %p174, %p175
      %p177 = scmp.ne.s32.totalorder %s169, %s172
      %p178 = scmp.eq.s32.totalorder %s23, 0
      %p179 = por %p177, %p178
      %p180 = scmp.ne.s32.totalorder %s169, %s172
      %p181 = scmp.eq.s32.totalorder %s28, 3
      %p182 = por %p180, %p181
      %p183 = scmp.ne.s32.totalorder %s172, %s173
      %p184 = scmp.eq.s32.totalorder %s28, 0
      %p185 = por %p183, %p184
      %p186 = scmp.ne.s32.totalorder %s172, %s173
      %p187 = scmp.eq.s32.totalorder %s29, 3
      %p188 = por %p186, %p187
      %p190 = scmp.ne.s32.totalorder %s173, %s189
      %p191 = scmp.eq.s32.totalorder %s29, 0
      %p192 = por %p190, %p191
      %p193 = scmp.le.s32.totalorder 1, %s23
      %p194 = scmp.lt.s32.totalorder %s23, 5
      %p195 = pnand %p193, %p194
      %p196 = pneg %p195
      // Predicated region
      $region9: #{tpu_custom_call.1} parent=5 // pred_check
        _
      $region10: #{tpu_custom_call.1} parent=5 // pred_check_branch
        %198 = sbr.rel (%p195) target = $region12
      $region11: #{tpu_custom_call.1} parent=5 // pred_region
        %s199 = ssub.s32 %s23, 1
        // Predicated region
        $region13: #{tpu_custom_call.1} parent=11 // pred_check
          %p200 = pneg %p96
        $region14: #{tpu_custom_call.1} parent=11 // pred_check_branch
          %202 = sbr.rel (%p200) target = $region16
        $region15: #{tpu_custom_call.1} parent=11 // pred_region
          %s204 = ssub.s32 2048, 2048
          %205 = vsyncadd [#allocation7], %s204
          %s206 = sshll.u32 [#allocation8], 4
          %s207 = int_to_ptr.vmem [resolvable:$true] %s206
          %212 = dma.hbm_to_vmem [thread:$0]  %s2, 2048, %s207, [#allocation7], 128, 128, 8
        $region16: #{tpu_custom_call.1} parent=11 // pred_fallthru
          _
        // Predicated region
        $region17: #{tpu_custom_call.1} parent=11 // pred_check
          %p213 = pneg %p117
        $region18: #{tpu_custom_call.1} parent=11 // pred_check_branch
          %215 = sbr.rel (%p213) target = $region20
        $region19: #{tpu_custom_call.1} parent=11 // pred_region
          _
        $region20: #{tpu_custom_call.1} parent=11 // pred_fallthru
          _
        // Predicated region
        $region21: #{tpu_custom_call.1} parent=11 // pred_check
          %p216 = pneg %p138
        $region22: #{tpu_custom_call.1} parent=11 // pred_check_branch
          %218 = sbr.rel (%p216) target = $region24
        $region23: #{tpu_custom_call.1} parent=11 // pred_region
          _
        $region24: #{tpu_custom_call.1} parent=11 // pred_fallthru
          _
        // Predicated region
        $region25: #{tpu_custom_call.1} parent=11 // pred_check
          %p219 = pneg %p159
        $region26: #{tpu_custom_call.1} parent=11 // pred_check_branch
          %221 = sbr.rel (%p219) target = $region28
        $region27: #{tpu_custom_call.1} parent=11 // pred_region
          _
        $region28: #{tpu_custom_call.1} parent=11 // pred_fallthru
          _
      $region12: #{tpu_custom_call.1} parent=5 // pred_fallthru
        _
      %p222 = scmp.lt.s32.totalorder %s23, 4
      // Predicated region
      $region29: #{tpu_custom_call.1} parent=5 // pred_check
        %p223 = pneg %p222
      $region30: #{tpu_custom_call.1} parent=5 // pred_check_branch
        %225 = sbr.rel (%p223) target = $region32
      $region31: #{tpu_custom_call.1} parent=5 // pred_region
        // Predicated region
        $region33: #{tpu_custom_call.1} parent=31 // pred_check
          %p226 = pneg %p43
        $region34: #{tpu_custom_call.1} parent=31 // pred_check_branch
          %228 = sbr.rel (%p226) target = $region36
        $region35: #{tpu_custom_call.1} parent=31 // pred_region
          %s229 = sand.u32 %s33, 1
          %s230 = scalar_lea.sflag [#allocation4], %s229
          %s231 = sand.u32 %s33, 1
          %s232 = smul.addr %s231, 128
          %s233 = scalar_lea.vmem [#allocation3], %s232
          %s234 = smul.u32 16, %s23
          %s236 = ssub.s32 2048, 2048
          %237 = vsyncadd %s230, %s236
          %s238 = smul.addr %s234, 128
          %s239 = scalar_lea.hbm %s0, %s238
          %s240 = sshll.u32 %s233, 4
          %s241 = int_to_ptr.vmem [resolvable:$true] %s240
          %246 = dma.hbm_to_vmem [thread:$0]  %s239, 2048, %s241, %s230, 128, 128, 8
        $region36: #{tpu_custom_call.1} parent=31 // pred_fallthru
          _
        // Predicated region
        $region37: #{tpu_custom_call.1} parent=31 // pred_check
          %p247 = pneg %p69
        $region38: #{tpu_custom_call.1} parent=31 // pred_check_branch
          %249 = sbr.rel (%p247) target = $region40
        $region39: #{tpu_custom_call.1} parent=31 // pred_region
          %s250 = sand.u32 %s23, 1
          %s251 = scalar_lea.sflag [#allocation7], %s250
          %s252 = sand.u32 %s59, 1
          %s253 = smul.addr %s252, 128
          %s254 = scalar_lea.vmem [#allocation6], %s253
          %s255 = smul.u32 16, %s23
          %s257 = ssub.s32 2048, 2048
          %258 = vsyncadd %s251, %s257
          %s259 = smul.addr %s255, 128
          %s260 = scalar_lea.hbm %s1, %s259
          %s261 = sshll.u32 %s254, 4
          %s262 = int_to_ptr.vmem [resolvable:$true] %s261
          %267 = dma.hbm_to_vmem [thread:$0]  %s260, 2048, %s262, %s251, 128, 128, 8
        $region40: #{tpu_custom_call.1} parent=31 // pred_fallthru
          _
      $region32: #{tpu_custom_call.1} parent=5 // pred_fallthru
        _
      %p268 = scmp.le.s32.totalorder 1, %s23
      %p269 = scmp.lt.s32.totalorder %s23, 5
      %p270 = pnand %p268, %p269
      %p271 = pneg %p270
      // Predicated region
      $region41: #{tpu_custom_call.1} parent=5 // pred_check
        _
      $region42: #{tpu_custom_call.1} parent=5 // pred_check_branch
        %273 = sbr.rel (%p270) target = $region44
      $region43: #{tpu_custom_call.1} parent=5 // pred_region
        %s274 = ssub.s32 %s23, 1
        %s275 = sand.u32 %s36, 1
        %s276 = scalar_lea.sflag [#allocation4], %s275
        %s277 = sand.u32 %s36, 1
        %s278 = smul.addr %s277, 128
        %s279 = scalar_lea.vmem [#allocation3], %s278
        // Predicated region
        $region45: #{tpu_custom_call.1} parent=43 // pred_check
          %p280 = pneg %p49
        $region46: #{tpu_custom_call.1} parent=43 // pred_check_branch
          %282 = sbr.rel (%p280) target = $region48
        $region47: #{tpu_custom_call.1} parent=43 // pred_region
          %283 = dma.done %s276, 2048
        $region48: #{tpu_custom_call.1} parent=43 // pred_fallthru
          _
        %s284 = sand.u32 %s28, 1
        %s285 = scalar_lea.sflag [#allocation7], %s284
        %s286 = sand.u32 %s62, 1
        %s287 = smul.addr %s286, 128
        %s288 = scalar_lea.vmem [#allocation6], %s287
        // Predicated region
        $region49: #{tpu_custom_call.1} parent=43 // pred_check
          %p289 = pneg %p75
        $region50: #{tpu_custom_call.1} parent=43 // pred_check_branch
          %291 = sbr.rel (%p289) target = $region52
        $region51: #{tpu_custom_call.1} parent=43 // pred_region
          %292 = dma.done %s285, 2048
        $region52: #{tpu_custom_call.1} parent=43 // pred_fallthru
          _
        // Predicated region
        $region53: #{tpu_custom_call.1} parent=43 // pred_check
          %p293 = pneg %p96
        $region54: #{tpu_custom_call.1} parent=43 // pred_check_branch
          %295 = sbr.rel (%p293) target = $region56
        $region55: #{tpu_custom_call.1} parent=43 // pred_region
          %296 = dma.done [#allocation7], 2048
        $region56: #{tpu_custom_call.1} parent=43 // pred_fallthru
          _
        %s297 = sand.u32 %s36, 1
        %s298 = scalar_lea.sflag [#allocation4], %s297
        %s299 = sand.u32 %s36, 1
        %s300 = smul.addr %s299, 128
        %s301 = scalar_lea.vmem [#allocation3], %s300
        %p302 = pneg %p49
        %p303 = pneg %p46
        %s304 = sand.u32 %s28, 1
        %s305 = scalar_lea.sflag [#allocation7], %s304
        %s306 = sand.u32 %s62, 1
        %s307 = smul.addr %s306, 128
        %s308 = scalar_lea.vmem [#allocation6], %s307
        %p309 = pneg %p75
        %p310 = pneg %p72
        %p311 = pneg %p96
        %p312 = pneg %p93
        %p313 = pneg %p117
        %p314 = pneg %p114
        %p315 = pneg %p138
        %p316 = pneg %p135
        %p317 = pneg %p159
        %p318 = pneg %p156
        %p319 = pneg %p185
        %p320 = pneg %p182
        %s321 = sand.u32 %s172, 1
        %s322 = scalar_lea.sflag [#allocation5], %s321
        %s323 = sand.u32 %s172, 1
        %s324 = smul.addr %s323, 4
        %s325 = scalar_lea.vmem [#allocation9], %s324
        %s326 = smul.u32 16, %s28
        %s327 = smul.u32 16, %s28
        %v328 = vld [vmem:[%s279] sm:$0xff]
        %v329 = vld [vmem:[%s279 + $0x8] sm:$0xff]
        %v330 = vld [vmem:[%s279 + $0x10] sm:$0xff]
        %v331 = vld [vmem:[%s279 + $0x18] sm:$0xff]
        %v332 = vld [vmem:[%s279 + $0x20] sm:$0xff]
        %v333 = vld [vmem:[%s279 + $0x28] sm:$0xff]
        %v334 = vld [vmem:[%s279 + $0x30] sm:$0xff]
        %v335 = vld [vmem:[%s279 + $0x38] sm:$0xff]
        %v336 = vld [vmem:[%s279 + $0x40] sm:$0xff]
        %v337 = vld [vmem:[%s279 + $0x48] sm:$0xff]
        %v338 = vld [vmem:[%s279 + $0x50] sm:$0xff]
        %v339 = vld [vmem:[%s279 + $0x58] sm:$0xff]
        %v340 = vld [vmem:[%s279 + $0x60] sm:$0xff]
        %v341 = vld [vmem:[%s279 + $0x68] sm:$0xff]
        %v342 = vld [vmem:[%s279 + $0x70] sm:$0xff]
        %v343 = vld [vmem:[%s279 + $0x78] sm:$0xff]
        %v344 = vld [vmem:[%s288] sm:$0xff]
        %v345 = vld [vmem:[%s288 + $0x8] sm:$0xff]
        %v346 = vld [vmem:[%s288 + $0x10] sm:$0xff]
        %v347 = vld [vmem:[%s288 + $0x18] sm:$0xff]
        %v348 = vld [vmem:[%s288 + $0x20] sm:$0xff]
        %v349 = vld [vmem:[%s288 + $0x28] sm:$0xff]
        %v350 = vld [vmem:[%s288 + $0x30] sm:$0xff]
        %v351 = vld [vmem:[%s288 + $0x38] sm:$0xff]
        %v352 = vld [vmem:[%s288 + $0x40] sm:$0xff]
        %v353 = vld [vmem:[%s288 + $0x48] sm:$0xff]
        %v354 = vld [vmem:[%s288 + $0x50] sm:$0xff]
        %v355 = vld [vmem:[%s288 + $0x58] sm:$0xff]
        %v356 = vld [vmem:[%s288 + $0x60] sm:$0xff]
        %v357 = vld [vmem:[%s288 + $0x68] sm:$0xff]
        %v358 = vld [vmem:[%s288 + $0x70] sm:$0xff]
        %v359 = vld [vmem:[%s288 + $0x78] sm:$0xff]
        %v360 = vsub.f32 %v328, %v344
        %v361 = vsub.f32 %v329, %v345
        %v362 = vsub.f32 %v330, %v346
        %v363 = vsub.f32 %v331, %v347
        %v364 = vsub.f32 %v332, %v348
        %v365 = vsub.f32 %v333, %v349
        %v366 = vsub.f32 %v334, %v350
        %v367 = vsub.f32 %v335, %v351
        %v368 = vsub.f32 %v336, %v352
        %v369 = vsub.f32 %v337, %v353
        %v370 = vsub.f32 %v338, %v354
        %v371 = vsub.f32 %v339, %v355
        %v372 = vsub.f32 %v340, %v356
        %v373 = vsub.f32 %v341, %v357
        %v374 = vsub.f32 %v342, %v358
        %v375 = vsub.f32 %v343, %v359
        %v376 = vmul.f32 %v360, %v360
        %v377 = vmul.f32 %v361, %v361
        %v378 = vmul.f32 %v362, %v362
        %v379 = vmul.f32 %v363, %v363
        %v380 = vmul.f32 %v364, %v364
        %v381 = vmul.f32 %v365, %v365
        %v382 = vmul.f32 %v366, %v366
        %v383 = vmul.f32 %v367, %v367
        %v384 = vmul.f32 %v368, %v368
        %v385 = vmul.f32 %v369, %v369
        %v386 = vmul.f32 %v370, %v370
        %v387 = vmul.f32 %v371, %v371
        %v388 = vmul.f32 %v372, %v372
        %v389 = vmul.f32 %v373, %v373
        %v390 = vmul.f32 %v374, %v374
        %v391 = vmul.f32 %v375, %v375
        %v392 = vld [vmem:[#allocation8] sm:$0xff]
        %v393 = vld [vmem:[#allocation8 + $0x8] sm:$0xff]
        %v394 = vld [vmem:[#allocation8 + $0x10] sm:$0xff]
        %v395 = vld [vmem:[#allocation8 + $0x18] sm:$0xff]
        %v396 = vld [vmem:[#allocation8 + $0x20] sm:$0xff]
        %v397 = vld [vmem:[#allocation8 + $0x28] sm:$0xff]
        %v398 = vld [vmem:[#allocation8 + $0x30] sm:$0xff]
        %v399 = vld [vmem:[#allocation8 + $0x38] sm:$0xff]
        %v400 = vld [vmem:[#allocation8 + $0x40] sm:$0xff]
        %v401 = vld [vmem:[#allocation8 + $0x48] sm:$0xff]
        %v402 = vld [vmem:[#allocation8 + $0x50] sm:$0xff]
        %v403 = vld [vmem:[#allocation8 + $0x58] sm:$0xff]
        %v404 = vld [vmem:[#allocation8 + $0x60] sm:$0xff]
        %v405 = vld [vmem:[#allocation8 + $0x68] sm:$0xff]
        %v406 = vld [vmem:[#allocation8 + $0x70] sm:$0xff]
        %v407 = vld [vmem:[#allocation8 + $0x78] sm:$0xff]
        %v408 = vld [vmem:[%s3] sm:$0x1]
        %v410 = vlaneseq
        %v411 = vshrl.u32 %v410, 7
        %v412 = vsub.s32 0, %v411
        %v413 = vrot.slane %v408, %v412
        %415 = vmatprep.subr.mxu0 0.0
        %416 = vmatpush1.msra.mxu0 %v392
        %417 = vmatprep.subr.mxu0 0.0
        %418 = vmatpush1.msra.mxu0 %v393
        %419 = vmatprep.subr.mxu0 0.0
        %420 = vmatpush1.msra.mxu0 %v394
        %421 = vmatprep.subr.mxu0 0.0
        %422 = vmatpush1.msra.mxu0 %v395
        %423 = vmatprep.subr.mxu0 0.0
        %424 = vmatpush1.msra.mxu0 %v396
        %425 = vmatprep.subr.mxu0 0.0
        %426 = vmatpush1.msra.mxu0 %v397
        %427 = vmatprep.subr.mxu0 0.0
        %428 = vmatpush1.msra.mxu0 %v398
        %429 = vmatprep.subr.mxu0 0.0
        %430 = vmatpush1.msra.mxu0 %v399
        %431 = vmatprep.subr.mxu0 0.0
        %432 = vmatpush1.msra.mxu0 %v400
        %433 = vmatprep.subr.mxu0 0.0
        %434 = vmatpush1.msra.mxu0 %v401
        %435 = vmatprep.subr.mxu0 0.0
        %436 = vmatpush1.msra.mxu0 %v402
        %437 = vmatprep.subr.mxu0 0.0
        %438 = vmatpush1.msra.mxu0 %v403
        %439 = vmatprep.subr.mxu0 0.0
        %440 = vmatpush1.msra.mxu0 %v404
        %441 = vmatprep.subr.mxu0 0.0
        %442 = vmatpush1.msra.mxu0 %v405
        %443 = vmatprep.subr.mxu0 0.0
        %444 = vmatpush1.msra.mxu0 %v406
        %445 = vmatprep.subr.mxu0 0.0
        %446 = vmatpush1.msra.mxu0 %v407
        %447 = vmatprep.subr.mxu0 0.0
        %448 = vmatpush1.msra.mxu0 0.0
        %449 = vmatprep.subr.mxu0 0.0
        %450 = vmatpush1.msra.mxu0 0.0
        %451 = vmatprep.subr.mxu0 0.0
        %452 = vmatpush1.msra.mxu0 0.0
        %453 = vmatprep.subr.mxu0 0.0
        %454 = vmatpush1.msra.mxu0 0.0
        %455 = vmatprep.subr.mxu0 0.0
        %456 = vmatpush1.msra.mxu0 0.0
        %457 = vmatprep.subr.mxu0 0.0
        %458 = vmatpush1.msra.mxu0 0.0
        %459 = vmatprep.subr.mxu0 0.0
        %460 = vmatpush1.msra.mxu0 0.0
        %461 = vmatprep.subr.mxu0 0.0
        %462 = vmatpush1.msra.mxu0 0.0
        %463 = vmatprep.subr.mxu0 0.0
        %464 = vmatpush1.msra.mxu0 0.0
        %465 = vmatprep.subr.mxu0 0.0
        %466 = vmatpush1.msra.mxu0 0.0
        %467 = vmatprep.subr.mxu0 0.0
        %468 = vmatpush1.msra.mxu0 0.0
        %469 = vmatprep.subr.mxu0 0.0
        %470 = vmatpush1.msra.mxu0 0.0
        %471 = vmatprep.subr.mxu0 0.0
        %472 = vmatpush1.msra.mxu0 0.0
        %473 = vmatprep.subr.mxu0 0.0
        %474 = vmatpush1.msra.mxu0 0.0
        %475 = vmatprep.subr.mxu0 0.0
        %476 = vmatpush1.msra.mxu0 0.0
        %477 = vmatprep.subr.mxu0 0.0
        %478 = vmatpush1.msra.mxu0 0.0
        %479 = vmatprep.mubr.f32.mxu0 0.0
        %480 = vmatmul.mubr.f32.gmra.mrb[0].mxu0 %v376
        %v481 = vpop.f32.mrb[0].mxu0
        %v482 = vadd.f32 %v413, %v481
        %v483 = vpop.f32.mrb[0].mxu0
        %484 = vmatprep.mubr.f32.mxu0 0.0
        %485 = vmatmul.mubr.f32.gmra.mrb[0].mxu0 %v377
        %v486 = vpop.f32.mrb[0].mxu0
        %v487 = vadd.f32 %v413, %v486
        %v488 = vpop.f32.mrb[0].mxu0
        %489 = vmatprep.mubr.f32.mxu0 0.0
        %490 = vmatmul.mubr.f32.gmra.mrb[0].mxu0 %v378
        %v491 = vpop.f32.mrb[0].mxu0
        %v492 = vadd.f32 %v413, %v491
        %v493 = vpop.f32.mrb[0].mxu0
        %494 = vmatprep.mubr.f32.mxu0 0.0
        %495 = vmatmul.mubr.f32.gmra.mrb[0].mxu0 %v379
        %v496 = vpop.f32.mrb[0].mxu0
        %v497 = vadd.f32 %v413, %v496
        %v498 = vpop.f32.mrb[0].mxu0
        %499 = vmatprep.mubr.f32.mxu0 0.0
        %500 = vmatmul.mubr.f32.gmra.mrb[0].mxu0 %v380
        %v501 = vpop.f32.mrb[0].mxu0
        %v502 = vadd.f32 %v413, %v501
        %v503 = vpop.f32.mrb[0].mxu0
        %504 = vmatprep.mubr.f32.mxu0 0.0
        %505 = vmatmul.mubr.f32.gmra.mrb[0].mxu0 %v381
        %v506 = vpop.f32.mrb[0].mxu0
        %v507 = vadd.f32 %v413, %v506
        %v508 = vpop.f32.mrb[0].mxu0
        %509 = vmatprep.mubr.f32.mxu0 0.0
        %510 = vmatmul.mubr.f32.gmra.mrb[0].mxu0 %v382
        %v511 = vpop.f32.mrb[0].mxu0
        %v512 = vadd.f32 %v413, %v511
        %v513 = vpop.f32.mrb[0].mxu0
        %514 = vmatprep.mubr.f32.mxu0 0.0
        %515 = vmatmul.mubr.f32.gmra.mrb[0].mxu0 %v383
        %v516 = vpop.f32.mrb[0].mxu0
        %v517 = vadd.f32 %v413, %v516
        %v518 = vpop.f32.mrb[0].mxu0
        %519 = vmatprep.mubr.f32.mxu0 0.0
        %520 = vmatmul.mubr.f32.gmra.mrb[0].mxu0 %v384
        %v521 = vpop.f32.mrb[0].mxu0
        %v522 = vadd.f32 %v413, %v521
        %v523 = vpop.f32.mrb[0].mxu0
        %524 = vmatprep.mubr.f32.mxu0 0.0
        %525 = vmatmul.mubr.f32.gmra.mrb[0].mxu0 %v385
        %v526 = vpop.f32.mrb[0].mxu0
        %v527 = vadd.f32 %v413, %v526
        %v528 = vpop.f32.mrb[0].mxu0
        %529 = vmatprep.mubr.f32.mxu0 0.0
        %530 = vmatmul.mubr.f32.gmra.mrb[0].mxu0 %v386
        %v531 = vpop.f32.mrb[0].mxu0
        %v532 = vadd.f32 %v413, %v531
        %v533 = vpop.f32.mrb[0].mxu0
        %534 = vmatprep.mubr.f32.mxu0 0.0
        %535 = vmatmul.mubr.f32.gmra.mrb[0].mxu0 %v387
        %v536 = vpop.f32.mrb[0].mxu0
        %v537 = vadd.f32 %v413, %v536
        %v538 = vpop.f32.mrb[0].mxu0
        %539 = vmatprep.mubr.f32.mxu0 0.0
        %540 = vmatmul.mubr.f32.gmra.mrb[0].mxu0 %v388
        %v541 = vpop.f32.mrb[0].mxu0
        %v542 = vadd.f32 %v413, %v541
        %v543 = vpop.f32.mrb[0].mxu0
        %544 = vmatprep.mubr.f32.mxu0 0.0
        %545 = vmatmul.mubr.f32.gmra.mrb[0].mxu0 %v389
        %v546 = vpop.f32.mrb[0].mxu0
        %v547 = vadd.f32 %v413, %v546
        %v548 = vpop.f32.mrb[0].mxu0
        %549 = vmatprep.mubr.f32.mxu0 0.0
        %550 = vmatmul.mubr.f32.gmra.mrb[0].mxu0 %v390
        %v551 = vpop.f32.mrb[0].mxu0
        %v552 = vadd.f32 %v413, %v551
        %v553 = vpop.f32.mrb[0].mxu0
        %554 = vmatprep.mubr.f32.mxu0 0.0
        %555 = vmatmul.mubr.f32.gmra.mrb[0].mxu0 %v391
        %v556 = vpop.f32.mrb[0].mxu0
        %v557 = vadd.f32 %v413, %v556
        %v558 = vpop.f32.mrb[0].mxu0
        %559 = vdwg.mxu0
        %v560 = vmax.f32 %v482, 0.0
        %v561 = vmax.f32 %v487, 0.0
        %v562 = vmax.f32 %v492, 0.0
        %v563 = vmax.f32 %v497, 0.0
        %v564 = vmax.f32 %v502, 0.0
        %v565 = vmax.f32 %v507, 0.0
        %v566 = vmax.f32 %v512, 0.0
        %v567 = vmax.f32 %v517, 0.0
        %v568 = vmax.f32 %v522, 0.0
        %v569 = vmax.f32 %v527, 0.0
        %v570 = vmax.f32 %v532, 0.0
        %v571 = vmax.f32 %v537, 0.0
        %v572 = vmax.f32 %v542, 0.0
        %v573 = vmax.f32 %v547, 0.0
        %v574 = vmax.f32 %v552, 0.0
        %v575 = vmax.f32 %v557, 0.0
        %v576 = vld [vmem:[%s4] sm:$0xf]
        %v577 = vld [vmem:[#allocation2] sm:$0x1]
        %v579 = vlaneseq
        %v580 = vshrl.u32 %v579, 7
        %v581 = vsub.s32 0, %v580
        %v582 = vrot.slane %v577, %v581
        %583 = vset.pattern.permute.xlu0 0
        %584 = vperm.xlu0 %583, %v582
        %v585 = vpop.permute.xlu0 %584
        %587 = vmatprep.subr.mxu0 0.0
        %588 = vmatpush1.xpose.msra.mxu0 %v560
        %589 = vmatprep.subr.mxu0 0.0
        %590 = vmatpush1.xpose.msra.mxu0 %v561
        %591 = vmatprep.subr.mxu0 0.0
        %592 = vmatpush1.xpose.msra.mxu0 %v562
        %593 = vmatprep.subr.mxu0 0.0
        %594 = vmatpush1.xpose.msra.mxu0 %v563
        %595 = vmatprep.subr.mxu0 0.0
        %596 = vmatpush1.xpose.msra.mxu0 %v564
        %597 = vmatprep.subr.mxu0 0.0
        %598 = vmatpush1.xpose.msra.mxu0 %v565
        %599 = vmatprep.subr.mxu0 0.0
        %600 = vmatpush1.xpose.msra.mxu0 %v566
        %601 = vmatprep.subr.mxu0 0.0
        %602 = vmatpush1.xpose.msra.mxu0 %v567
        %603 = vmatprep.subr.mxu0 0.0
        %604 = vmatpush1.xpose.msra.mxu0 %v568
        %605 = vmatprep.subr.mxu0 0.0
        %606 = vmatpush1.xpose.msra.mxu0 %v569
        %607 = vmatprep.subr.mxu0 0.0
        %608 = vmatpush1.xpose.msra.mxu0 %v570
        %609 = vmatprep.subr.mxu0 0.0
        %610 = vmatpush1.xpose.msra.mxu0 %v571
        %611 = vmatprep.subr.mxu0 0.0
        %612 = vmatpush1.xpose.msra.mxu0 %v572
        %613 = vmatprep.subr.mxu0 0.0
        %614 = vmatpush1.xpose.msra.mxu0 %v573
        %615 = vmatprep.subr.mxu0 0.0
        %616 = vmatpush1.xpose.msra.mxu0 %v574
        %617 = vmatprep.subr.mxu0 0.0
        %618 = vmatpush1.xpose.msra.mxu0 %v575
        %619 = vmatprep.subr.mxu0 0.0
        %620 = vmatpush1.xpose.msra.mxu0 0.0
        %621 = vmatprep.subr.mxu0 0.0
        %622 = vmatpush1.xpose.msra.mxu0 0.0
        %623 = vmatprep.subr.mxu0 0.0
        %624 = vmatpush1.xpose.msra.mxu0 0.0
        %625 = vmatprep.subr.mxu0 0.0
        %626 = vmatpush1.xpose.msra.mxu0 0.0
        %627 = vmatprep.subr.mxu0 0.0
        %628 = vmatpush1.xpose.msra.mxu0 0.0
        %629 = vmatprep.subr.mxu0 0.0
        %630 = vmatpush1.xpose.msra.mxu0 0.0
        %631 = vmatprep.subr.mxu0 0.0
        %632 = vmatpush1.xpose.msra.mxu0 0.0
        %633 = vmatprep.subr.mxu0 0.0
        %634 = vmatpush1.xpose.msra.mxu0 0.0
        %635 = vmatprep.subr.mxu0 0.0
        %636 = vmatpush1.xpose.msra.mxu0 0.0
        %637 = vmatprep.subr.mxu0 0.0
        %638 = vmatpush1.xpose.msra.mxu0 0.0
        %639 = vmatprep.subr.mxu0 0.0
        %640 = vmatpush1.xpose.msra.mxu0 0.0
        %641 = vmatprep.subr.mxu0 0.0
        %642 = vmatpush1.xpose.msra.mxu0 0.0
        %643 = vmatprep.subr.mxu0 0.0
        %644 = vmatpush1.xpose.msra.mxu0 0.0
        %645 = vmatprep.subr.mxu0 0.0
        %646 = vmatpush1.xpose.msra.mxu0 0.0
        %647 = vmatprep.subr.mxu0 0.0
        %648 = vmatpush1.xpose.msra.mxu0 0.0
        %649 = vmatprep.subr.mxu0 0.0
        %650 = vmatpush1.xpose.msra.mxu0 0.0
        %651 = vmatprep.mubr.f32.mxu0 0.0
        %652 = vmatmul.mubr.f32.gmra.mrb[0].mxu0 %v576
        %v653 = vpop.f32.mrb[0].mxu0
        %v654 = vadd.f32 %v585, %v653
        %v655 = vpop.f32.mrb[0].mxu0
        %656 = vdwg.mxu0
        %v657 = vxor.u32 %v654, 2147483648
        %v658 = vmul.f32 %v657, 1.442695
        %v659 = vpow.pop %v658
        %v660 = vadd.f32 %v659, 1.0
        %v661 = vrcp.pop %v660
        %v662 = vmul.f32 1.0, %v661
        %663 = vst [vmem:[%s325] sm:$0xf] %v662
        %s664 = sand.u32 %s172, 1
        %s665 = scalar_lea.sflag [#allocation5], %s664
        %s666 = sand.u32 %s172, 1
        %s667 = smul.addr %s666, 4
        %s668 = scalar_lea.vmem [#allocation9], %s667
        // Predicated region
        $region57: #{tpu_custom_call.1} parent=43 // pred_check
          %p669 = pneg %p182
        $region58: #{tpu_custom_call.1} parent=43 // pred_check_branch
          %671 = sbr.rel (%p669) target = $region60
        $region59: #{tpu_custom_call.1} parent=43 // pred_region
          %s673 = ssub.s32 64, 64
          %674 = vsyncadd %s665, %s673
          %s675 = smul.addr %s28, 64
          %s676 = scalar_lea.hbm %s6, %s675
          %s678 = sshll.u32 %s668, 4
          %s679 = int_to_ptr.vmem [resolvable:$true] %s678
          %681 = dma.vmem_to_hbm [thread:$0]  %s679, 64, %s676, %s665
        $region60: #{tpu_custom_call.1} parent=43 // pred_fallthru
          _
      $region44: #{tpu_custom_call.1} parent=5 // pred_fallthru
        _
      %p682 = scmp.le.s32.totalorder 2, %s23
      // Predicated region
      $region61: #{tpu_custom_call.1} parent=5 // pred_check
        %p683 = pneg %p682
      $region62: #{tpu_custom_call.1} parent=5 // pred_check_branch
        %685 = sbr.rel (%p683) target = $region64
      $region63: #{tpu_custom_call.1} parent=5 // pred_region
        %s686 = ssub.s32 %s23, 2
        // Predicated region
        $region65: #{tpu_custom_call.1} parent=63 // pred_check
          %p687 = pneg %p188
        $region66: #{tpu_custom_call.1} parent=63 // pred_check_branch
          %689 = sbr.rel (%p687) target = $region68
        $region67: #{tpu_custom_call.1} parent=63 // pred_region
          %s690 = sand.u32 %s173, 1
          %s691 = scalar_lea.sflag [#allocation5], %s690
          %s692 = sand.u32 %s173, 1
          %s693 = smul.addr %s692, 4
          %s694 = scalar_lea.vmem [#allocation9], %s693
          %695 = dma.done %s691, 64
        $region68: #{tpu_custom_call.1} parent=63 // pred_fallthru
          _
      $region64: #{tpu_custom_call.1} parent=5 // pred_fallthru
        _
    $region6: #{tpu_custom_call.1} parent=1 // loop_footer
      %s27 = sadd.s32 1, %s23
    $region7: #{tpu_custom_call.1} parent=1 // loop_footer_branch
      %22 = sbr.rel target = $region3
    $region8: #{tpu_custom_call.1} parent=1 // loop_exit
      _
    %696 = vsyncpa [#allocation4], 1
    %s697 = scalar_lea.sflag [#allocation4], 1
    %698 = vsyncpa %s697, 1
    %699 = vsyncpa [#allocation7], 1
    %s700 = scalar_lea.sflag [#allocation7], 1
    %701 = vsyncpa %s700, 1
    %702 = vsyncpa [#allocation5], 1
    %s703 = scalar_lea.sflag [#allocation5], 1
    %704 = vsyncpa %s703, 1

</llo_original>
